<compile_context>
chip_gen: v7x
topology: tpu7x:2x2x1
jax: 0.10.0
libtpu: 0.0.40
codegen_flags: <defaults>
</compile_context>

<pallas_src>
import functools

import jax
import jax.numpy as jnp
from jax.experimental import pallas as pl
from jax.experimental.pallas import tpu as pltpu

LANES = 128     # vreg lane width
TM_MAX = 1024   # sublane rows per grid step -> 512 KiB f32 block (fits all gens)


def _masked_sq(pred_f32, tgt_f32, drop_mask):
    """Squared error where `drop_mask` elements contribute exactly 0."""
    pred_masked = jnp.where(drop_mask, 0.0, pred_f32)
    tgt_clean = jnp.where(drop_mask, 0.0, tgt_f32)
    diff = pred_masked - tgt_clean
    return diff * diff


def _reduce_kernel(pred_ref, tgt_ref, sum_ref, cnt_ref, sq_acc, nan_acc,
                   *, total_rows, tm, need_row_mask):
    """Accumulate masked squared error (f32) and NaN count (int32) over the grid."""
    i = pl.program_id(0)

    @pl.when(i == 0)
    def _():
        sq_acc[...] = jnp.zeros_like(sq_acc)
        nan_acc[...] = jnp.zeros_like(nan_acc)

    pred = pred_ref[...].astype(jnp.float32)
    tgt = tgt_ref[...].astype(jnp.float32)
    nan_mask = jnp.isnan(tgt)

    if need_row_mask:
        # Ragged last block: rows >= total_rows hold unspecified data; drop them.
        row = i * tm + jax.lax.broadcasted_iota(jnp.int32, (tm, LANES), 0)
        valid = row < total_rows
        drop = jnp.logical_or(nan_mask, jnp.logical_not(valid))
        count_mask = jnp.logical_and(nan_mask, valid)
    else:
        drop = nan_mask
        count_mask = nan_mask

    # Per-step work stays on the VPU: elementwise sq + vector accumulate.
    sq_acc[...] += _masked_sq(pred, tgt, drop)
    nan_acc[...] += count_mask.astype(jnp.int32)

    # Cross-lane reduction + scalar SMEM store only once, in the epilogue.
    @pl.when(i == pl.num_programs(0) - 1)
    def _():
        sum_ref[0, 0] = jnp.sum(sq_acc[...])
        cnt_ref[0, 0] = jnp.sum(nan_acc[...])


def _none_kernel(pred_ref, tgt_ref, out_ref):
    """Elementwise masked squared error (reduction='none')."""
    pred = pred_ref[...].astype(jnp.float32)
    tgt = tgt_ref[...].astype(jnp.float32)
    nan_mask = jnp.isnan(tgt)
    out_ref[...] = _masked_sq(pred, tgt, nan_mask).astype(out_ref.dtype)


def _prep(prediction, target):
    """Flatten (free) to a lane-dense (M, 128) slab; pad at most LANES-1 elements.

    Padding uses pred=0 / target=0, which contributes 0 to both the squared-error
    sum and the NaN count, so no post-hoc correction is needed.
    """
    n = prediction.size
    pad = (-n) % LANES
    pred_flat = prediction.reshape(-1)
    tgt_flat = target.reshape(-1)
    if pad:
        pred_flat = jnp.pad(pred_flat, (0, pad))
        tgt_flat = jnp.pad(tgt_flat, (0, pad))
    M = (n + pad) // LANES
    return pred_flat.reshape(M, LANES), tgt_flat.reshape(M, LANES), n, pad, M


@functools.partial(jax.jit, static_argnames=("reduction",))
def mse_loss_masked(prediction, target, reduction="mean"):
    orig_shape = prediction.shape
    pred2, tgt2, n, pad, M = _prep(prediction, target)

    # Big blocks amortize per-step pipeline overhead; if the whole array is small,
    # a single full-extent block (always legal) is used.
    tm = M if M <= TM_MAX else TM_MAX
    grid = (pl.cdiv(M, tm),)
    blk = pl.BlockSpec((tm, LANES), lambda i: (i, 0))

    if reduction == "none":
        out = pl.pallas_call(
            _none_kernel,
            out_shape=jax.ShapeDtypeStruct((M, LANES), prediction.dtype),
            grid=grid,
            in_specs=[blk, blk],
            out_specs=blk,
            compiler_params=pltpu.CompilerParams(
                dimension_semantics=("parallel",)),
        )(pred2, tgt2)
        if pad:
            return out.reshape(-1)[:n].reshape(orig_shape)
        return out.reshape(orig_shape)

    need_row_mask = (M % tm) != 0
    kernel = functools.partial(_reduce_kernel, total_rows=M, tm=tm,
                               need_row_mask=need_row_mask)
    sq_sum, nan_cnt = pl.pallas_call(
        kernel,
        out_shape=(jax.ShapeDtypeStruct((1, 1), jnp.float32),
                   jax.ShapeDtypeStruct((1, 1), jnp.int32)),
        grid=grid,
        in_specs=[blk, blk],
        out_specs=(pl.BlockSpec(memory_space=pltpu.SMEM),
                   pl.BlockSpec(memory_space=pltpu.SMEM)),
        scratch_shapes=[pltpu.VMEM((tm, LANES), jnp.float32),
                        pltpu.VMEM((tm, LANES), jnp.int32)],
        compiler_params=pltpu.CompilerParams(
            dimension_semantics=("arbitrary",)),
    )(pred2, tgt2)

    # Integer-exact denominator, converted to f32 only for the final division.
    denom = (jnp.int32(n) - nan_cnt[0, 0]).astype(jnp.float32)
    return sq_sum[0, 0] / denom


def _reference(prediction, target, reduction="mean"):
    nan_mask = jnp.isnan(target)
    pred_masked = prediction * (~nan_mask).astype(prediction.dtype)
    tgt_clean = jnp.nan_to_num(target)
    sq = (pred_masked - tgt_clean) ** 2
    if reduction == "none":
        return sq
    denom = prediction.size - jnp.sum(nan_mask)
    return jnp.sum(sq) / denom


def _run_case(key, shape):
    k1, k2, k3 = jax.random.split(key, 3)
    prediction = jax.random.normal(k1, shape, dtype=jnp.float32)
    target = jax.random.normal(k2, shape, dtype=jnp.float32)
    nan_sel = jax.random.uniform(k3, shape) < 0.2     # ~20% NaNs in target
    target = jnp.where(nan_sel, jnp.nan, target)

    # reduction='mean' (default)
    loss = mse_loss_masked(prediction, target)
    jax.block_until_ready(loss)
    ref = _reference(prediction, target)
    assert jnp.allclose(loss, ref, rtol=1e-5, atol=1e-6), (shape, loss, ref)

    # reduction='none'
    loss_none = mse_loss_masked(prediction, target, reduction="none")
    jax.block_until_ready(loss_none)
    ref_none = _reference(prediction, target, reduction="none")
    assert loss_none.shape == shape
    assert loss_none.dtype == prediction.dtype
    assert jnp.allclose(loss_none, ref_none, rtol=1e-5, atol=1e-6), shape


if __name__ == "__main__":
    key = jax.random.PRNGKey(0)
    k_a, k_b = jax.random.split(key)

    # NCHW as in the PyTorch module; small synthetic shapes.
    _run_case(k_a, (2, 4, 16, 16))   # lane-aligned size (no padding)
    _run_case(k_b, (3, 5, 7, 11))    # odd size -> exercises the <128-element pad path

    print("KERNEL_OK")
</pallas_src>

<mosaic_0001>
module attributes {stable_mosaic.version = 11 : i64} {
  func.func @_reduce_kernel(%arg0: i32, %arg1: memref<16x128xf32, #tpu.memory_space<vmem>>, %arg2: memref<16x128xf32, #tpu.memory_space<vmem>>, %arg3: memref<1x1xf32, #tpu.memory_space<smem>>, %arg4: memref<1x1xi32, #tpu.memory_space<smem>>, %arg5: memref<16x128xf32, #tpu.memory_space<vmem>>, %arg6: memref<16x128xi32, #tpu.memory_space<vmem>>) attributes {dimension_semantics = [#tpu.dimension_semantics<arbitrary>], iteration_bounds = array<i64: 1>, scalar_prefetch = 0 : i64, scratch_operands = 2 : i64, tpu.core_type = #tpu.core_type<tc>, window_params = [{transform_indices = @transform_0, window_bounds = array<i64: 16, 128>}, {transform_indices = @transform_1, window_bounds = array<i64: 16, 128>}, {transform_indices = @transform_2, window_bounds = array<i64: 1, 1>}, {transform_indices = @transform_3, window_bounds = array<i64: 1, 1>}]} {
    %c0_i32 = arith.constant 0 : i32
    %0 = arith.cmpi eq, %arg0, %c0_i32 : i32
    %1 = arith.extui %0 : i1 to i32
    %c0_i32_0 = arith.constant 0 : i32
    %2 = arith.cmpi ne, %1, %c0_i32_0 : i32
    scf.if %2 {
      %cst_15 = arith.constant 0.000000e+00 : f32
      %22 = vector.broadcast %cst_15 : f32 to vector<16x128xf32>
      %c0_16 = arith.constant 0 : index
      %c0_17 = arith.constant 0 : index
      %23 = vector.load %arg5[%c0_16, %c0_17] : memref<16x128xf32, #tpu.memory_space<vmem>>, vector<16x128xf32>
      tpu.vector_store %arg5[%c0_16, %c0_17], %22 {strides = array<i32>} : memref<16x128xf32, #tpu.memory_space<vmem>>, vector<16x128xf32>,
      %c0_i32_18 = arith.constant 0 : i32
      %24 = vector.broadcast %c0_i32_18 : i32 to vector<16x128xi32>
      %c0_19 = arith.constant 0 : index
      %c0_20 = arith.constant 0 : index
      %25 = vector.load %arg6[%c0_19, %c0_20] : memref<16x128xi32, #tpu.memory_space<vmem>>, vector<16x128xi32>
      tpu.vector_store %arg6[%c0_19, %c0_20], %24 {strides = array<i32>} : memref<16x128xi32, #tpu.memory_space<vmem>>, vector<16x128xi32>,
    } else {
    }
    %c0 = arith.constant 0 : index
    %c0_1 = arith.constant 0 : index
    %3 = vector.load %arg1[%c0, %c0_1] : memref<16x128xf32, #tpu.memory_space<vmem>>, vector<16x128xf32>
    %c0_2 = arith.constant 0 : index
    %c0_3 = arith.constant 0 : index
    %4 = vector.load %arg2[%c0_2, %c0_3] : memref<16x128xf32, #tpu.memory_space<vmem>>, vector<16x128xf32>
    %5 = arith.cmpf one, %4, %4 : vector<16x128xf32>
    %c0_4 = arith.constant 0 : index
    %c0_5 = arith.constant 0 : index
    %6 = vector.load %arg5[%c0_4, %c0_5] : memref<16x128xf32, #tpu.memory_space<vmem>>, vector<16x128xf32>
    %cst = arith.constant 0.000000e+00 : f32
    %7 = vector.broadcast %cst : f32 to vector<16x128xf32>
    %8 = arith.select %5, %7, %3 : vector<16x128xi1>, vector<16x128xf32>
    %cst_6 = arith.constant 0.000000e+00 : f32
    %9 = vector.broadcast %cst_6 : f32 to vector<16x128xf32>
    %10 = arith.select %5, %9, %4 : vector<16x128xi1>, vector<16x128xf32>
    %11 = arith.subf %8, %10 : vector<16x128xf32>
    %12 = arith.mulf %11, %11 : vector<16x128xf32>
    %13 = arith.addf %6, %12 : vector<16x128xf32>
    %c0_7 = arith.constant 0 : index
    %c0_8 = arith.constant 0 : index
    %14 = vector.load %arg5[%c0_7, %c0_8] : memref<16x128xf32, #tpu.memory_space<vmem>>, vector<16x128xf32>
    tpu.vector_store %arg5[%c0_7, %c0_8], %13 {strides = array<i32>} : memref<16x128xf32, #tpu.memory_space<vmem>>, vector<16x128xf32>,
    %c0_9 = arith.constant 0 : index
    %c0_10 = arith.constant 0 : index
    %15 = vector.load %arg6[%c0_9, %c0_10] : memref<16x128xi32, #tpu.memory_space<vmem>>, vector<16x128xi32>
    %16 = arith.extui %5 : vector<16x128xi1> to vector<16x128xi32>
    %17 = arith.addi %15, %16 : vector<16x128xi32>
    %c0_11 = arith.constant 0 : index
    %c0_12 = arith.constant 0 : index
    %18 = vector.load %arg6[%c0_11, %c0_12] : memref<16x128xi32, #tpu.memory_space<vmem>>, vector<16x128xi32>
    tpu.vector_store %arg6[%c0_11, %c0_12], %17 {strides = array<i32>} : memref<16x128xi32, #tpu.memory_space<vmem>>, vector<16x128xi32>,
    %c0_i32_13 = arith.constant 0 : i32
    %19 = arith.cmpi eq, %arg0, %c0_i32_13 : i32
    %20 = arith.extui %19 : i1 to i32
    %c0_i32_14 = arith.constant 0 : i32
    %21 = arith.cmpi ne, %20, %c0_i32_14 : i32
    scf.if %21 {
      %c0_15 = arith.constant 0 : index
      %c0_16 = arith.constant 0 : index
      %22 = vector.load %arg5[%c0_15, %c0_16] : memref<16x128xf32, #tpu.memory_space<vmem>>, vector<16x128xf32>
      %23 = vector.shape_cast %22 : vector<16x128xf32> to vector<1x16x128xf32>
      %cst_17 = arith.constant dense<0.000000e+00> : vector<1xf32>
      %24 = vector.multi_reduction <add>, %23, %cst_17 [1, 2] : vector<1x16x128xf32> to vector<1xf32>
      %25 = vector.shape_cast %24 : vector<1xf32> to vector<1x1x1xf32>
      %26 = vector.extract %25[0, 0, 0] : f32 from vector<1x1x1xf32>
      %c0_18 = arith.constant 0 : index
      %c0_19 = arith.constant 0 : index
      %27 = memref.load %arg3[%c0_18, %c0_19] : memref<1x1xf32, #tpu.memory_space<smem>>
      memref.store %26, %arg3[%c0_18, %c0_19] : memref<1x1xf32, #tpu.memory_space<smem>>
      %c0_20 = arith.constant 0 : index
      %c0_21 = arith.constant 0 : index
      %28 = vector.load %arg6[%c0_20, %c0_21] : memref<16x128xi32, #tpu.memory_space<vmem>>, vector<16x128xi32>
      %29 = vector.shape_cast %28 : vector<16x128xi32> to vector<1x16x128xi32>
      %cst_22 = arith.constant dense<0> : vector<1xi32>
      %30 = vector.multi_reduction <add>, %29, %cst_22 [1, 2] : vector<1x16x128xi32> to vector<1xi32>
      %31 = vector.shape_cast %30 : vector<1xi32> to vector<1x1x1xi32>
      %32 = vector.extract %31[0, 0, 0] : i32 from vector<1x1x1xi32>
      %c0_23 = arith.constant 0 : index
      %c0_24 = arith.constant 0 : index
      %33 = memref.load %arg4[%c0_23, %c0_24] : memref<1x1xi32, #tpu.memory_space<smem>>
      memref.store %32, %arg4[%c0_23, %c0_24] : memref<1x1xi32, #tpu.memory_space<smem>>
    } else {
    }
    return
  }
  func.func @transform_0(%arg0: i32) -> (i32, i32) {
    %c0_i32 = arith.constant 0 : i32
    %c0_i32_0 = arith.constant 0 : i32
    return %arg0, %c0_i32 : i32, i32
  }
  func.func @transform_1(%arg0: i32) -> (i32, i32) {
    %c0_i32 = arith.constant 0 : i32
    %c0_i32_0 = arith.constant 0 : i32
    return %arg0, %c0_i32 : i32, i32
  }
  func.func @transform_2(%arg0: i32) -> (i32, i32) {
    %c0_i32 = arith.constant 0 : i32
    %c0_i32_0 = arith.constant 0 : i32
    %c0_i32_1 = arith.constant 0 : i32
    return %c0_i32, %c0_i32_0 : i32, i32
  }
  func.func @transform_3(%arg0: i32) -> (i32, i32) {
    %c0_i32 = arith.constant 0 : i32
    %c0_i32_0 = arith.constant 0 : i32
    %c0_i32_1 = arith.constant 0 : i32
    return %c0_i32, %c0_i32_0 : i32, i32
  }
}

</mosaic_0001>

<llo_original>
// kernel: mse_loss_masked.1
$region0: #{mse_loss_masked.1}
  #allocation0 [shape = 'u32[]', space=smem, size = 0x4, offset = 0x4, fixed_abs, tag = 'smem constant byte address 0x4 - core index']
  #allocation1 [shape = 'u32[144,128]{1,0:T(1,128)}', space=vmem, size = 0x12000, scoped, tag = 'internal scratch']
  #allocation2 [shape = 'f32[16,128]{1,0:T(8,128)}', space=vmem, size = 0x2000, scoped, tag = 'scratch operand']
  #allocation3 [shape = 's32[16,128]{1,0:T(8,128)}', space=vmem, size = 0x2000, scoped, tag = 'scratch operand']
  %s0 = inlined_call_operand.vmem [shape: f32[16,128], index: 0, kind: input, shape index: {}]
  %s1 = inlined_call_operand.vmem [shape: f32[16,128], index: 1, kind: input, shape index: {}]
  %s2 = inlined_call_operand.hbm [shape: f32[1,1], index: 2, kind: output, shape index: {0}]
  %s3 = inlined_call_operand.hbm [shape: s32[1,1], index: 3, kind: output, shape index: {1}]
  %4 = xla_tuple %s2, %s3
  %s5 = sld [smem:[#allocation0]]
  $region34: #{mse_loss_masked.1} parent=0
    _
  %s7 = ssub.s32 1, %s5
  %s8 = scalar_select 0, %s7, %s5
  $region1: #{mse_loss_masked.1} parent=0
    #allocation4 [shape = 'u8[512]{0}', space=smem, size = 0x200, scoped, tag = 'output window, operand 0, single buffered']
    #allocation5 [shape = 's32[1]{0}', space=sflag, size = 0x4, scoped, tag = 'scoped memory for mse_loss_masked.1']
    #allocation6 [shape = 'u8[512]{0}', space=smem, size = 0x200, scoped, tag = 'output window, operand 1, single buffered']
    #allocation7 [shape = 's32[1]{0}', space=sflag, size = 0x4, scoped, tag = 'scoped memory for mse_loss_masked.1']
    %9 = vsyncpa [#allocation5], 0
    %10 = vsyncpa [#allocation7], 0
    // Predicated region
    $region2: #{mse_loss_masked.1} parent=1 // pred_check
      _
    $region3: #{mse_loss_masked.1} parent=1 // pred_check_branch
      %12 = sbr.rel (0) target = $region5
    $region4: #{mse_loss_masked.1} parent=1 // pred_region
      _
    $region5: #{mse_loss_masked.1} parent=1 // pred_fallthru
      _
    // Predicated region
    $region6: #{mse_loss_masked.1} parent=1 // pred_check
      _
    $region7: #{mse_loss_masked.1} parent=1 // pred_check_branch
      %14 = sbr.rel (0) target = $region9
    $region8: #{mse_loss_masked.1} parent=1 // pred_region
      _
    $region9: #{mse_loss_masked.1} parent=1 // pred_fallthru
      _
    %p15 = scmp.eq.s32.totalorder 0, 0
    // Predicated region
    $region10: #{mse_loss_masked.1} parent=1 // pred_check
      %p16 = pneg %p15
    $region11: #{mse_loss_masked.1} parent=1 // pred_check_branch
      %18 = sbr.rel (%p16) target = $region13
    $region12: #{mse_loss_masked.1} parent=1 // pred_region
      %19 = vst [vmem:[#allocation2] sm:$0xff] 0.0
      %20 = vst [vmem:[#allocation2 + $0x8] sm:$0xff] 0.0
      %21 = vst [vmem:[#allocation3] sm:$0xff] 0
      %22 = vst [vmem:[#allocation3 + $0x8] sm:$0xff] 0
    $region13: #{mse_loss_masked.1} parent=1 // pred_fallthru
      _
    %v23 = vld [vmem:[%s0] sm:$0xff]
    %v24 = vld [vmem:[%s0 + $0x8] sm:$0xff]
    %v25 = vld [vmem:[%s1] sm:$0xff]
    %v26 = vld [vmem:[%s1 + $0x8] sm:$0xff]
    %vm27 = vcmp.ne.f32.partialorder %v25, %v25
    %vm28 = vcmp.ne.f32.partialorder %v26, %v26
    %v29 = vld [vmem:[#allocation2] sm:$0xff]
    %v30 = vld [vmem:[#allocation2 + $0x8] sm:$0xff]
    %v31 = vsel %vm27, 0.0, %v23
    %v32 = vsel %vm28, 0.0, %v24
    %v33 = vsel %vm27, 0.0, %v25
    %v34 = vsel %vm28, 0.0, %v26
    %v35 = vsub.f32 %v31, %v33
    %v36 = vsub.f32 %v32, %v34
    %v37 = vmul.f32 %v35, %v35
    %v38 = vmul.f32 %v36, %v36
    %v39 = vadd.f32 %v29, %v37
    %v40 = vadd.f32 %v30, %v38
    %41 = vst [vmem:[#allocation2] sm:$0xff] %v39
    %42 = vst [vmem:[#allocation2 + $0x8] sm:$0xff] %v40
    %v43 = vld [vmem:[#allocation3] sm:$0xff]
    %v44 = vld [vmem:[#allocation3 + $0x8] sm:$0xff]
    %v45 = vsel %vm27, 1, 0
    %v46 = vsel %vm28, 1, 0
    %v47 = vadd.s32 %v43, %v45
    %v48 = vadd.s32 %v44, %v46
    %49 = vst [vmem:[#allocation3] sm:$0xff] %v47
    %50 = vst [vmem:[#allocation3 + $0x8] sm:$0xff] %v48
    // Predicated region
    $region14: #{mse_loss_masked.1} parent=1 // pred_check
      %p51 = pneg %p15
    $region15: #{mse_loss_masked.1} parent=1 // pred_check_branch
      %53 = sbr.rel (%p51) target = $region17
    $region16: #{mse_loss_masked.1} parent=1 // pred_region
      %v54 = vld [vmem:[#allocation2] sm:$0xff]
      %v55 = vld [vmem:[#allocation2 + $0x8] sm:$0xff]
      %v56 = vadd.f32 %v54, %v55
      %57 = vadd.xlane.f32.xlu0 %v56
      %v58 = vpop.xlane.xlu0 %57
      %v59 = vrot.slane %v58, 4
      %v60 = vadd.f32 %v58, %v59
      %v61 = vrot.slane %v60, 2
      %v62 = vadd.f32 %v60, %v61
      %v63 = vrot.slane %v62, 1
      %v64 = vadd.f32 %v62, %v63
      %s65 = vtos %v64
      %s66 = scalar_lea.smem [#allocation4], 0
      %67 = sst [smem:[%s66]] %s65
      %v68 = vld [vmem:[#allocation3] sm:$0xff]
      %v69 = vld [vmem:[#allocation3 + $0x8] sm:$0xff]
      %v70 = vadd.s32 %v68, %v69
      %v71 = vand.u32 %v70, 65535
      %v72 = vshrl.u32 %v70, 16
      %v73 = vcvt.s32.f32 %v71
      %v74 = vcvt.s32.f32 %v72
      %75 = vadd.xlane.f32.xlu0 %v73
      %v76 = vpop.xlane.xlu0 %75
      %77 = vadd.xlane.f32.xlu0 %v74
      %v78 = vpop.xlane.xlu0 %77
      %v79 = vcvt.f32.s32 %v76
      %v80 = vcvt.f32.s32 %v78
      %v81 = vshll.u32 %v80, 16
      %v82 = vadd.s32 %v81, %v79
      %v83 = vrot.slane %v82, 4
      %v84 = vadd.s32 %v82, %v83
      %v85 = vrot.slane %v84, 2
      %v86 = vadd.s32 %v84, %v85
      %v87 = vrot.slane %v86, 1
      %v88 = vadd.s32 %v86, %v87
      %s89 = vtos %v88
      %s90 = scalar_lea.smem [#allocation6], 0
      %91 = sst [smem:[%s90]] %s89
    $region17: #{mse_loss_masked.1} parent=1 // pred_fallthru
      _
    // Predicated region
    $region18: #{mse_loss_masked.1} parent=1 // pred_check
      _
    $region19: #{mse_loss_masked.1} parent=1 // pred_check_branch
      %93 = sbr.rel (0) target = $region21
    $region20: #{mse_loss_masked.1} parent=1 // pred_region
      %s95 = ssub.s32 16, 16
      %96 = vsyncadd [#allocation5], %s95
      %99 = dma.smem_to_hbm [#allocation4], 16, %s2, [#allocation5]
    $region21: #{mse_loss_masked.1} parent=1 // pred_fallthru
      _
    // Predicated region
    $region22: #{mse_loss_masked.1} parent=1 // pred_check
      _
    $region23: #{mse_loss_masked.1} parent=1 // pred_check_branch
      %101 = sbr.rel (0) target = $region25
    $region24: #{mse_loss_masked.1} parent=1 // pred_region
      %s103 = ssub.s32 16, 16
      %104 = vsyncadd [#allocation7], %s103
      %107 = dma.smem_to_hbm [#allocation6], 16, %s3, [#allocation7]
    $region25: #{mse_loss_masked.1} parent=1 // pred_fallthru
      _
    // Predicated region
    $region26: #{mse_loss_masked.1} parent=1 // pred_check
      _
    $region27: #{mse_loss_masked.1} parent=1 // pred_check_branch
      %109 = sbr.rel (0) target = $region29
    $region28: #{mse_loss_masked.1} parent=1 // pred_region
      %110 = dma.done [#allocation5], 16
    $region29: #{mse_loss_masked.1} parent=1 // pred_fallthru
      _
    // Predicated region
    $region30: #{mse_loss_masked.1} parent=1 // pred_check
      _
    $region31: #{mse_loss_masked.1} parent=1 // pred_check_branch
      %112 = sbr.rel (0) target = $region33
    $region32: #{mse_loss_masked.1} parent=1 // pred_region
      %113 = dma.done [#allocation7], 16
    $region33: #{mse_loss_masked.1} parent=1 // pred_fallthru
      _
    %114 = sfence
    %115 = vsyncpa [#allocation5], 1
    %116 = vsyncpa [#allocation7], 1

</llo_original>
